<compile_context>
chip_gen: v5e
topology: v5e:2x2
jax: 0.10.0
libtpu: 0.0.40
codegen_flags: <defaults>
</compile_context>

<pallas_src>
from functools import partial
from math import sqrt

import jax
import jax.numpy as jnp
from jax.experimental import pallas as pl
from jax.experimental.pallas import tpu as pltpu

_LANE = 128
_TARGET_TILE_BYTES = 2 * 1024 * 1024  # ~2 MiB tiles -> 12 MiB double-buffered footprint


# --------------------------------------------------------------------------- #
# Kernels
# --------------------------------------------------------------------------- #
def _cbp_ema_kernel(decay_ref, x_ref, feat_ref, new_feat_ref):
    """new_features = d * features + (1 - d) * x  (EMA on the VPU, f32 math)."""
    d = decay_ref[0]  # SMEM scalar
    x = x_ref[...].astype(jnp.float32)
    f = feat_ref[...].astype(jnp.float32)
    new_feat_ref[...] = (f * d + (1.0 - d) * x).astype(new_feat_ref.dtype)


def _cbp_first_kernel(decay_ref, x_ref, new_feat_ref):
    """First call (features is None): new_features = (1 - d) * x. One input only."""
    d = decay_ref[0]
    x = x_ref[...].astype(jnp.float32)
    new_feat_ref[...] = ((1.0 - d) * x).astype(new_feat_ref.dtype)


# --------------------------------------------------------------------------- #
# Layout / tiling planning (all static, shape-derived)
# --------------------------------------------------------------------------- #
def _sublane(itemsize):
    # 8 rows per sublane-group for 32-bit, 16 for 16-bit (bf16 packing), 32 for 8-bit.
    return 8 if itemsize >= 4 else (16 if itemsize == 2 else 32)


def _plan_view(shape, itemsize):
    """2D (R, C) view of a contiguous buffer, lane-dense (C % 128 == 0) if possible."""
    n = 1
    for s in shape:
        n *= s
    last = shape[-1]
    if last % _LANE == 0:
        return (n // last, last)
    if n % _LANE == 0:
        # Grow the row width by powers of two while it still divides the total,
        # capped so a single row stays a reasonable DMA chunk (~512 KiB).
        c = _LANE
        cap = max(_LANE, (512 * 1024) // itemsize)
        while n % (c * 2) == 0 and c * 2 <= cap:
            c *= 2
        return (n // c, c)
    # Fallback: keep the original last dim (masked partial stores, but correct).
    return (n // last, last)


def _pick_tiles(R, C, itemsize, target_tile_bytes=_TARGET_TILE_BYTES):
    """Tile (tr, tc) of the (R, C) view, ~target bytes, (8,128)-legal."""
    sub = _sublane(itemsize)
    lane_multiple = (C % _LANE == 0)

    # Column tile: keep the full row unless one sublane-group of rows already
    # blows the budget (very wide feature dims). Only legal to split columns
    # when C is a multiple of 128; otherwise accept the full row (rare).
    if lane_multiple and sub * C * itemsize > target_tile_bytes:
        tc = (target_tile_bytes // (sub * itemsize)) // _LANE * _LANE
        tc = max(_LANE, min(tc, C))
    else:
        tc = C

    # Row tile: fill the remaining budget in sublane-sized multiples.
    row_bytes = max(tc * itemsize, 1)
    tr = (target_tile_bytes // row_bytes) // sub * sub
    tr = max(sub, tr)
    if tr >= R:
        tr = R

    # Megacore: give the ("parallel", "parallel") grid at least two steps for
    # buffers big enough that one TensorCore's DMA engines may not saturate HBM.
    total_bytes = R * C * itemsize
    if total_bytes > 4 * 1024 * 1024 and tr >= R and tc >= C and R > sub:
        half = -(-R // 2)
        tr_split = -(-half // sub) * sub
        if tr_split < R:
            tr = tr_split
    return tr, tc


# --------------------------------------------------------------------------- #
# Jitted wrappers (donation makes input_output_aliases a true in-place update)
# --------------------------------------------------------------------------- #
@partial(jax.jit, donate_argnums=(2,))
def _ema_update(decay, x, features):
    """features <- decay * features + (1 - decay) * x (in place over `features`)."""
    itemsize = jnp.dtype(x.dtype).itemsize
    R, C = _plan_view(x.shape, itemsize)
    tr, tc = _pick_tiles(R, C, itemsize)
    x2 = x.reshape(R, C)
    f2 = features.reshape(R, C)
    decay_arr = jnp.full((1,), decay, dtype=jnp.float32)

    tile = pl.BlockSpec((tr, tc), lambda i, j: (i, j))
    smem = pl.BlockSpec(memory_space=pltpu.MemorySpace.SMEM)

    new2 = pl.pallas_call(
        _cbp_ema_kernel,
        out_shape=jax.ShapeDtypeStruct((R, C), features.dtype),
        grid_spec=pltpu.PrefetchScalarGridSpec(
            num_scalar_prefetch=0,
            grid=(pl.cdiv(R, tr), pl.cdiv(C, tc)),
            in_specs=[smem, tile, tile],
            out_specs=tile,
        ),
        # Write the EMA in place over the incoming (donated) features buffer.
        input_output_aliases={2: 0},
        compiler_params=pltpu.CompilerParams(
            dimension_semantics=("parallel", "parallel"),
        ),
    )(decay_arr, x2, f2)
    return new2.reshape(x.shape)


@jax.jit
def _first_update(decay, x):
    """features <- (1 - decay) * x  (no zeros materialization, single input read)."""
    itemsize = jnp.dtype(x.dtype).itemsize
    R, C = _plan_view(x.shape, itemsize)
    tr, tc = _pick_tiles(R, C, itemsize)
    x2 = x.reshape(R, C)
    decay_arr = jnp.full((1,), decay, dtype=jnp.float32)

    tile = pl.BlockSpec((tr, tc), lambda i, j: (i, j))
    smem = pl.BlockSpec(memory_space=pltpu.MemorySpace.SMEM)

    new2 = pl.pallas_call(
        _cbp_first_kernel,
        out_shape=jax.ShapeDtypeStruct((R, C), x.dtype),
        grid_spec=pltpu.PrefetchScalarGridSpec(
            num_scalar_prefetch=0,
            grid=(pl.cdiv(R, tr), pl.cdiv(C, tc)),
            in_specs=[smem, tile],
            out_specs=tile,
        ),
        compiler_params=pltpu.CompilerParams(
            dimension_semantics=("parallel", "parallel"),
        ),
    )(decay_arr, x2)
    return new2.reshape(x.shape)


# --------------------------------------------------------------------------- #
# Public wrapper: mirrors CBPLinear.forward + the log_features forward hook
# --------------------------------------------------------------------------- #
def cbp_linear_forward(x, features, decay_rate):
    """Returns (output, new_features); output is x (forward is identity).

    `features` may be None (mirrors the PyTorch buffer before first use).
    `decay_rate` is a host Python scalar (hyper-parameter).
    NOTE: when `features` is provided it is donated / clobbered in place;
    do not reuse the old features array after this call.
    """
    # decay_rate == 0 (CBPLinear default): features <- x. Host short-circuit:
    # no kernel, no HBM traffic.
    if float(decay_rate) == 0.0:
        return x, x
    if features is None:
        return x, _first_update(float(decay_rate), x)
    return x, _ema_update(float(decay_rate), x, features)


class CBPLinearState:
    """Deterministic mirror of CBPLinear.__init__ parameter/buffer setup."""

    def __init__(self, key, in_features, hidden_features, out_features,
                 replacement_rate=0.0001, maturity_threshold=100,
                 init="kaiming", act_type="relu", decay_rate=0.0):
        k1, k2, k3, k4 = jax.random.split(key, 4)
        # in_layer: nn.Linear(in_features, hidden_features) -- not used by forward.
        b_in = sqrt(1.0 / in_features)
        self.in_weight = jax.random.uniform(k1, (hidden_features, in_features),
                                            jnp.float32, -b_in, b_in)
        self.in_bias = jax.random.uniform(k2, (hidden_features,),
                                          jnp.float32, -b_in, b_in)
        # out_layer: nn.Linear(hidden_features, out_features)
        b_out = sqrt(1.0 / hidden_features)
        self.out_weight = jax.random.uniform(k3, (out_features, hidden_features),
                                             jnp.float32, -b_out, b_out)
        self.out_bias = jax.random.uniform(k4, (out_features,),
                                           jnp.float32, -b_out, b_out)
        # CBP buffers.
        self.util = jnp.zeros((hidden_features,), jnp.float32)
        self.ages = jnp.zeros((hidden_features,), jnp.float32)
        self.accumulated_num_features_to_replace = jnp.zeros((1,), jnp.float32)
        self.features = None  # set by the forward hook
        self.replacement_rate = replacement_rate
        self.maturity_threshold = maturity_threshold
        self.decay_rate = decay_rate
        gain = sqrt(2.0) if act_type == "relu" else 1.0  # calculate_gain('relu')
        self.bound = gain * sqrt(3.0 / in_features)      # init='kaiming' branch
        # TODO(synk): get_features_to_reinit / reinit_features / reinit (topk-based
        # selective reinitialization) are host-side maintenance ops outside the
        # forward pass and are not implemented as Pallas kernels here.


if __name__ == "__main__":
    key = jax.random.PRNGKey(0)
    k_state, k_x, k_f, k_x2, k_f2 = jax.random.split(key, 5)

    batch, in_feat, hidden, out_feat = 8, 64, 96, 32  # hidden % 128 != 0 on purpose
    state = CBPLinearState(k_state, in_feat, hidden, out_feat)

    # Input to CBPLinear = activation coming out of in_layer: (batch, hidden).
    x = jax.random.normal(k_x, (batch, hidden), jnp.float32)

    # 1) Default config: decay_rate == 0 -> features = x (host short-circuit).
    out0, feats0 = cbp_linear_forward(x, None, state.decay_rate)
    out0, feats0 = jax.block_until_ready((out0, feats0))
    assert jnp.array_equal(out0, x), "forward must be identity"
    assert jnp.array_equal(feats0, x)

    # 2) decay_rate > 0, features None -> (1 - d) * x (one-input kernel path,
    #    exercises the lane-dense reshape since 96 is not a multiple of 128).
    d = 0.9
    out1, feats1 = cbp_linear_forward(x, None, d)
    out1, feats1 = jax.block_until_ready((out1, feats1))
    assert jnp.array_equal(out1, x), "forward must be identity"
    assert jnp.allclose(feats1, (1.0 - d) * x, atol=1e-6)

    # 3) decay_rate > 0 with an existing features buffer -> EMA (aliased kernel).
    prev = jax.random.normal(k_f, (batch, hidden), jnp.float32)
    ref = jax.block_until_ready(d * prev + (1.0 - d) * x)  # before prev is donated
    out2, feats2 = cbp_linear_forward(x, prev, d)
    out2, feats2 = jax.block_until_ready((out2, feats2))
    assert jnp.array_equal(out2, x), "forward must be identity"
    assert jnp.allclose(feats2, ref, atol=1e-6)

    # 4) Odd shape (total not a multiple of 128) -> masked-store fallback path.
    x_odd = jax.random.normal(k_x2, (5, 7), jnp.float32)
    prev_odd = jax.random.normal(k_f2, (5, 7), jnp.float32)
    d2 = 0.5
    ref_odd = jax.block_until_ready(d2 * prev_odd + (1.0 - d2) * x_odd)
    out3, feats3 = cbp_linear_forward(x_odd, prev_odd, d2)
    out3, feats3 = jax.block_until_ready((out3, feats3))
    assert jnp.array_equal(out3, x_odd), "forward must be identity"
    assert jnp.allclose(feats3, ref_odd, atol=1e-6)

    print("KERNEL_OK")
</pallas_src>

<mosaic_0001>
module attributes {stable_mosaic.version = 11 : i64} {
  func.func @_cbp_first_kernel(%arg0: i32, %arg1: i32, %arg2: memref<1xf32, #tpu.memory_space<smem>>, %arg3: memref<3x256xf32, #tpu.memory_space<vmem>>, %arg4: memref<3x256xf32, #tpu.memory_space<vmem>>) attributes {dimension_semantics = [#tpu.dimension_semantics<parallel>, #tpu.dimension_semantics<parallel>], iteration_bounds = array<i64: 1, 1>, scalar_prefetch = 0 : i64, scratch_operands = 0 : i64, tpu.core_type = #tpu.core_type<tc>, window_params = [{transform_indices = @transform_0, window_bounds = array<i64: 1>}, {transform_indices = @transform_1, window_bounds = array<i64: 3, 256>}, {transform_indices = @transform_2, window_bounds = array<i64: 3, 256>}]} {
    %c0 = arith.constant 0 : index
    %0 = memref.load %arg2[%c0] : memref<1xf32, #tpu.memory_space<smem>>
    %c0_0 = arith.constant 0 : index
    %c0_1 = arith.constant 0 : index
    %1 = vector.load %arg3[%c0_0, %c0_1] : memref<3x256xf32, #tpu.memory_space<vmem>>, vector<3x256xf32>
    %cst = arith.constant 1.000000e+00 : f32
    %2 = arith.subf %cst, %0 : f32
    %3 = vector.broadcast %2 : f32 to vector<3x256xf32>
    %4 = arith.mulf %3, %1 : vector<3x256xf32>
    %c0_2 = arith.constant 0 : index
    %c0_3 = arith.constant 0 : index
    %5 = vector.load %arg4[%c0_2, %c0_3] : memref<3x256xf32, #tpu.memory_space<vmem>>, vector<3x256xf32>
    tpu.vector_store %arg4[%c0_2, %c0_3], %4 {strides = array<i32>} : memref<3x256xf32, #tpu.memory_space<vmem>>, vector<3x256xf32>,
    return
  }
  func.func @transform_0(%arg0: i32, %arg1: i32) -> i32 {
    %c0_i32 = arith.constant 0 : i32
    %c0_i32_0 = arith.constant 0 : i32
    return %c0_i32 : i32
  }
  func.func @transform_1(%arg0: i32, %arg1: i32) -> (i32, i32) {
    %c0_i32 = arith.constant 0 : i32
    return %arg0, %arg1 : i32, i32
  }
  func.func @transform_2(%arg0: i32, %arg1: i32) -> (i32, i32) {
    %c0_i32 = arith.constant 0 : i32
    return %arg0, %arg1 : i32, i32
  }
}

</mosaic_0001>

<llo_original>
// kernel: _first_update.1
$region0: #{_first_update.1}
  #allocation0 [shape = 'u32[]', space=smem, size = 0x4, offset = 0x4, fixed_abs, tag = 'smem constant byte address 0x4 - core index']
  #allocation1 [shape = 'u32[72,128]{1,0:T(1,128)}', space=vmem, size = 0x9000, scoped, tag = 'internal scratch']
  #allocation2 [shape = 'f32[1]{0:T(128)S(6)}', space=smem, size = 0x200, scoped, tag = 'scoped memory for _first_update.1']
  %s0 = inlined_call_operand.<no memory space> [shape: f32[1], index: 0, kind: input, shape index: {}]
  %s1 = inlined_call_operand.vmem [shape: f32[3,256], index: 1, kind: input, shape index: {}]
  %s2 = inlined_call_operand.vmem [shape: f32[3,256], index: 2, kind: output, shape index: {}]
  %s3 = sld [smem:[#allocation0]]
  $region18: #{_first_update.1} parent=0
    _
  %s5 = ssub.s32 1, %s3
  %s6 = scalar_select 0, %s5, %s3
  %7 = sst [smem:[#allocation2]] %s0
  // Predicated region
  $region2: #{_first_update.1} parent=0 // pred_check
    _
  $region3: #{_first_update.1} parent=0 // pred_check_branch
    %9 = sbr.rel (0) target = $region5
  $region4: #{_first_update.1} parent=0 // pred_region
    _
  $region5: #{_first_update.1} parent=0 // pred_fallthru
    _
  // Predicated region
  $region6: #{_first_update.1} parent=0 // pred_check
    _
  $region7: #{_first_update.1} parent=0 // pred_check_branch
    %11 = sbr.rel (0) target = $region9
  $region8: #{_first_update.1} parent=0 // pred_region
    _
  $region9: #{_first_update.1} parent=0 // pred_fallthru
    _
  %s12 = sld [smem:[#allocation2]]
  %v13 = vld [vmem:[%s1] sm:$0x77]
  %s14 = ssub.f32 1.0, %s12
  %v15 = vstv %s14
  %v16 = vmul.f32 %v15, %v13
  %17 = vst [vmem:[%s2] sm:$0x77] %v16
  // Predicated region
  $region10: #{_first_update.1} parent=0 // pred_check
    _
  $region11: #{_first_update.1} parent=0 // pred_check_branch
    %19 = sbr.rel (0) target = $region13
  $region12: #{_first_update.1} parent=0 // pred_region
    _
  $region13: #{_first_update.1} parent=0 // pred_fallthru
    _
  // Predicated region
  $region14: #{_first_update.1} parent=0 // pred_check
    _
  $region15: #{_first_update.1} parent=0 // pred_check_branch
    %21 = sbr.rel (0) target = $region17
  $region16: #{_first_update.1} parent=0 // pred_region
    _
  $region17: #{_first_update.1} parent=0 // pred_fallthru
    _

</llo_original>
